<compile_context>
chip_gen: v7x
topology: tpu7x:2x2x1
jax: 0.10.0
libtpu: 0.0.40
codegen_flags: <defaults>
</compile_context>

<pallas_src>
import jax
import jax.numpy as jnp
from jax import lax
from jax.experimental import pallas as pl
from jax.experimental.pallas import tpu as pltpu

QMIN = 0
QMAX = 255

_LANES_BIG = 512        # lane width for large tensors (multiple of 128)
_MAX_BLOCK_ROWS = 512   # 512 x 512 x 4B = 1 MiB per f32 tile -> safe on all generations


def _round_up(x, m):
    return -(-x // m) * m


def _slab_config(total):
    """Pick a lane-dense slab layout and tile size for `total` elements."""
    lanes = _LANES_BIG if total >= _LANES_BIG * 8 else 128
    rows = -(-total // lanes)
    block_rows = min(_MAX_BLOCK_ROWS, _round_up(rows, 8))
    rows_padded = _round_up(rows, block_rows)
    return rows_padded, lanes, block_rows


# ----------------------------- Pallas kernels ------------------------------ #

def _minmax_kernel(x_ref, min_ref, max_ref, vmin_ref, vmax_ref):
    """Tiled global min/max reduction.

    vmin_ref / vmax_ref: VMEM scratch accumulators (one tile's shape), elementwise-updated
    per grid step; the cross-lane/sublane reduce happens only at the last step.
    """
    @pl.when(pl.program_id(0) == 0)
    def _():
        vmin_ref[...] = jnp.full(vmin_ref.shape, jnp.inf, dtype=vmin_ref.dtype)
        vmax_ref[...] = jnp.full(vmax_ref.shape, -jnp.inf, dtype=vmax_ref.dtype)

    x = x_ref[...].astype(jnp.float32)
    vmin_ref[...] = jnp.minimum(vmin_ref[...], x)
    vmax_ref[...] = jnp.maximum(vmax_ref[...], x)

    @pl.when(pl.program_id(0) == pl.num_programs(0) - 1)
    def _():
        min_ref[0] = jnp.min(vmin_ref[...])
        max_ref[0] = jnp.max(vmax_ref[...])


def _fake_quant_kernel(params_ref, x_ref, o_ref):
    """Per-tensor affine fake quantization on one tile.

    params_ref (SMEM, f32[3]): [scale, inv_scale, zero_point]
    """
    scale = params_ref[0]
    inv_scale = params_ref[1]
    zp = params_ref[2]

    x = x_ref[...].astype(jnp.float32)
    q = jnp.clip(jnp.round(x * inv_scale) + zp, float(QMIN), float(QMAX))
    o_ref[...] = ((q - zp) * scale).astype(o_ref.dtype)


# ------------------------------ JAX wrappers ------------------------------- #

def _observe_min_max(slab, block_rows, lanes):
    rows_padded = slab.shape[0]
    return pl.pallas_call(
        _minmax_kernel,
        grid=(rows_padded // block_rows,),
        in_specs=[pl.BlockSpec((block_rows, lanes), lambda i: (i, 0))],
        out_specs=[
            pl.BlockSpec(memory_space=pltpu.SMEM),
            pl.BlockSpec(memory_space=pltpu.SMEM),
        ],
        out_shape=(
            jax.ShapeDtypeStruct((1,), jnp.float32),
            jax.ShapeDtypeStruct((1,), jnp.float32),
        ),
        scratch_shapes=[
            pltpu.VMEM((block_rows, lanes), jnp.float32),
            pltpu.VMEM((block_rows, lanes), jnp.float32),
        ],
        compiler_params=pltpu.CompilerParams(dimension_semantics=("arbitrary",)),
    )(slab)


def _fake_quantize(slab, scale, zero_point, block_rows, lanes, out_dtype):
    rows_padded = slab.shape[0]
    params = jnp.stack([scale, 1.0 / scale, zero_point]).astype(jnp.float32)
    return pl.pallas_call(
        _fake_quant_kernel,
        grid=(rows_padded // block_rows,),
        in_specs=[
            pl.BlockSpec(memory_space=pltpu.SMEM),
            pl.BlockSpec((block_rows, lanes), lambda i: (i, 0)),
        ],
        out_specs=pl.BlockSpec((block_rows, lanes), lambda i: (i, 0)),
        out_shape=jax.ShapeDtypeStruct((rows_padded, lanes), out_dtype),
        compiler_params=pltpu.CompilerParams(dimension_semantics=("parallel",)),
    )(params, slab)


def _calculate_qparams(min_val, max_val):
    """Per-tensor affine qparams for quint8 [0, 255] (MinMaxObserver semantics)."""
    min_val = jnp.minimum(min_val, 0.0)
    max_val = jnp.maximum(max_val, 0.0)
    scale = (max_val - min_val) / jnp.float32(QMAX - QMIN)
    scale = jnp.maximum(scale, jnp.finfo(jnp.float32).eps)
    zero_point = jnp.float32(QMIN) - jnp.round(min_val / scale)
    zero_point = jnp.clip(zero_point, jnp.float32(QMIN), jnp.float32(QMAX))
    return scale, zero_point


@jax.jit
def fake_quantize_forward(x, running_min, running_max,
                          fake_quant_enabled, observer_enabled):
    """Forward pass of FakeQuantize (concrete FakeQuantizeBase).

    x: (N, C, H, W) float, NCHW as in PyTorch (kernels are layout-invariant elementwise).
    running_min / running_max: scalar f32 observer state (buffers).
    fake_quant_enabled / observer_enabled: uint8-like flags (0 or 1).
    Returns: (y, new_running_min, new_running_max), y same shape/dtype as x.
    """
    orig_shape = x.shape
    orig_dtype = x.dtype
    total = x.size

    rows_padded, lanes, block_rows = _slab_config(total)
    x_flat = x.reshape(-1)
    pad = rows_padded * lanes - total
    if pad:
        # Replicate the first element: neutral for min/max, stripped after fake-quant.
        x_flat = jnp.concatenate([x_flat, jnp.broadcast_to(x_flat[:1], (pad,))])
    slab = x_flat.reshape(rows_padded, lanes)

    # --- observer step: skip the entire HBM pass when disabled ---
    def _run_observer():
        bmin, bmax = _observe_min_max(slab, block_rows, lanes)
        return (jnp.minimum(running_min, bmin[0]),
                jnp.maximum(running_max, bmax[0]))

    new_min, new_max = lax.cond(
        jnp.any(observer_enabled != 0),
        _run_observer,
        lambda: (running_min, running_max),
    )

    # --- calculate_qparams (O(1) glue in plain JAX) ---
    scale, zero_point = _calculate_qparams(new_min, new_max)

    # --- fake quantization step: skip the entire read+write pass when disabled ---
    def _run_fake_quant():
        y_slab = _fake_quantize(slab, scale, zero_point, block_rows, lanes, orig_dtype)
        y_flat = y_slab.reshape(-1)
        if pad:
            y_flat = y_flat[:total]
        return y_flat.reshape(orig_shape)

    y = lax.cond(jnp.any(fake_quant_enabled != 0), _run_fake_quant, lambda: x)

    return y, new_min, new_max


# --------------------------------- main ------------------------------------ #

if __name__ == "__main__":
    key = jax.random.PRNGKey(0)
    x = jax.random.normal(key, (2, 4, 16, 16), dtype=jnp.float32)

    # Buffers registered in __init__ (deterministic init, no checkpoint):
    fake_quant_enabled = jnp.array(1, dtype=jnp.uint8)
    observer_enabled = jnp.array(1, dtype=jnp.uint8)
    # Observer running stats start "empty" (MinMaxObserver semantics).
    running_min = jnp.float32(jnp.inf)
    running_max = jnp.float32(-jnp.inf)

    y, new_min, new_max = fake_quantize_forward(
        x, running_min, running_max, fake_quant_enabled, observer_enabled)
    jax.block_until_ready(y)

    # Pure-JAX reference check of observer + fake-quant math.
    mn = jnp.minimum(jnp.min(x), 0.0)
    mx = jnp.maximum(jnp.max(x), 0.0)
    scale = jnp.maximum((mx - mn) / (QMAX - QMIN), jnp.finfo(jnp.float32).eps)
    zp = jnp.clip(QMIN - jnp.round(mn / scale), QMIN, QMAX)
    ref = (jnp.clip(jnp.round(x / scale) + zp, QMIN, QMAX) - zp) * scale
    assert jnp.allclose(y, ref, atol=1e-5), "fake-quant mismatch vs reference"
    assert jnp.allclose(new_min, jnp.min(x)), "running_min mismatch"
    assert jnp.allclose(new_max, jnp.max(x)), "running_max mismatch"

    # Disabled flags: whole kernel passes are skipped, output is identity, stats untouched.
    y_off, mn_off, mx_off = fake_quantize_forward(
        x, running_min, running_max,
        jnp.array(0, dtype=jnp.uint8), jnp.array(0, dtype=jnp.uint8))
    jax.block_until_ready(y_off)
    assert jnp.array_equal(y_off, x), "disabled fake-quant must be identity"
    assert jnp.isinf(mn_off) and jnp.isinf(mx_off), "disabled observer must not update stats"

    print("KERNEL_OK")
</pallas_src>

<mosaic_0001>
module attributes {stable_mosaic.version = 11 : i64} {
  func.func @_minmax_kernel(%arg0: i32, %arg1: memref<16x128xf32, #tpu.memory_space<vmem>>, %arg2: memref<1xf32, #tpu.memory_space<smem>>, %arg3: memref<1xf32, #tpu.memory_space<smem>>, %arg4: memref<16x128xf32, #tpu.memory_space<vmem>>, %arg5: memref<16x128xf32, #tpu.memory_space<vmem>>) attributes {dimension_semantics = [#tpu.dimension_semantics<arbitrary>], iteration_bounds = array<i64: 1>, scalar_prefetch = 0 : i64, scratch_operands = 2 : i64, tpu.core_type = #tpu.core_type<tc>, window_params = [{transform_indices = @transform_0, window_bounds = array<i64: 16, 128>}, {transform_indices = @transform_1, window_bounds = array<i64: 1>}, {transform_indices = @transform_2, window_bounds = array<i64: 1>}]} {
    %c0_i32 = arith.constant 0 : i32
    %0 = arith.cmpi eq, %arg0, %c0_i32 : i32
    %1 = arith.extui %0 : i1 to i32
    %c0_i32_0 = arith.constant 0 : i32
    %2 = arith.cmpi ne, %1, %c0_i32_0 : i32
    scf.if %2 {
      %cst = arith.constant 0x7F800000 : f32
      %13 = vector.broadcast %cst : f32 to vector<16x128xf32>
      %c0_12 = arith.constant 0 : index
      %c0_13 = arith.constant 0 : index
      %14 = vector.load %arg4[%c0_12, %c0_13] : memref<16x128xf32, #tpu.memory_space<vmem>>, vector<16x128xf32>
      tpu.vector_store %arg4[%c0_12, %c0_13], %13 {strides = array<i32>} : memref<16x128xf32, #tpu.memory_space<vmem>>, vector<16x128xf32>,
      %cst_14 = arith.constant 0xFF800000 : f32
      %15 = vector.broadcast %cst_14 : f32 to vector<16x128xf32>
      %c0_15 = arith.constant 0 : index
      %c0_16 = arith.constant 0 : index
      %16 = vector.load %arg5[%c0_15, %c0_16] : memref<16x128xf32, #tpu.memory_space<vmem>>, vector<16x128xf32>
      tpu.vector_store %arg5[%c0_15, %c0_16], %15 {strides = array<i32>} : memref<16x128xf32, #tpu.memory_space<vmem>>, vector<16x128xf32>,
    } else {
    }
    %c0 = arith.constant 0 : index
    %c0_1 = arith.constant 0 : index
    %3 = vector.load %arg1[%c0, %c0_1] : memref<16x128xf32, #tpu.memory_space<vmem>>, vector<16x128xf32>
    %c0_2 = arith.constant 0 : index
    %c0_3 = arith.constant 0 : index
    %4 = vector.load %arg4[%c0_2, %c0_3] : memref<16x128xf32, #tpu.memory_space<vmem>>, vector<16x128xf32>
    %5 = arith.minimumf %4, %3 : vector<16x128xf32>
    %c0_4 = arith.constant 0 : index
    %c0_5 = arith.constant 0 : index
    %6 = vector.load %arg4[%c0_4, %c0_5] : memref<16x128xf32, #tpu.memory_space<vmem>>, vector<16x128xf32>
    tpu.vector_store %arg4[%c0_4, %c0_5], %5 {strides = array<i32>} : memref<16x128xf32, #tpu.memory_space<vmem>>, vector<16x128xf32>,
    %c0_6 = arith.constant 0 : index
    %c0_7 = arith.constant 0 : index
    %7 = vector.load %arg5[%c0_6, %c0_7] : memref<16x128xf32, #tpu.memory_space<vmem>>, vector<16x128xf32>
    %8 = arith.maximumf %7, %3 : vector<16x128xf32>
    %c0_8 = arith.constant 0 : index
    %c0_9 = arith.constant 0 : index
    %9 = vector.load %arg5[%c0_8, %c0_9] : memref<16x128xf32, #tpu.memory_space<vmem>>, vector<16x128xf32>
    tpu.vector_store %arg5[%c0_8, %c0_9], %8 {strides = array<i32>} : memref<16x128xf32, #tpu.memory_space<vmem>>, vector<16x128xf32>,
    %c0_i32_10 = arith.constant 0 : i32
    %10 = arith.cmpi eq, %arg0, %c0_i32_10 : i32
    %11 = arith.extui %10 : i1 to i32
    %c0_i32_11 = arith.constant 0 : i32
    %12 = arith.cmpi ne, %11, %c0_i32_11 : i32
    scf.if %12 {
      %c0_12 = arith.constant 0 : index
      %c0_13 = arith.constant 0 : index
      %13 = vector.load %arg4[%c0_12, %c0_13] : memref<16x128xf32, #tpu.memory_space<vmem>>, vector<16x128xf32>
      %14 = vector.shape_cast %13 : vector<16x128xf32> to vector<1x16x128xf32>
      %cst = arith.constant dense<0x7F800000> : vector<1xf32>
      %15 = vector.multi_reduction <minimumf>, %14, %cst [1, 2] : vector<1x16x128xf32> to vector<1xf32>
      %16 = vector.shape_cast %15 : vector<1xf32> to vector<1x1x1xf32>
      %17 = vector.extract %16[0, 0, 0] : f32 from vector<1x1x1xf32>
      %c0_14 = arith.constant 0 : index
      %18 = memref.load %arg2[%c0_14] : memref<1xf32, #tpu.memory_space<smem>>
      memref.store %17, %arg2[%c0_14] : memref<1xf32, #tpu.memory_space<smem>>
      %c0_15 = arith.constant 0 : index
      %c0_16 = arith.constant 0 : index
      %19 = vector.load %arg5[%c0_15, %c0_16] : memref<16x128xf32, #tpu.memory_space<vmem>>, vector<16x128xf32>
      %20 = vector.shape_cast %19 : vector<16x128xf32> to vector<1x16x128xf32>
      %cst_17 = arith.constant dense<0xFF800000> : vector<1xf32>
      %21 = vector.multi_reduction <maximumf>, %20, %cst_17 [1, 2] : vector<1x16x128xf32> to vector<1xf32>
      %22 = vector.shape_cast %21 : vector<1xf32> to vector<1x1x1xf32>
      %23 = vector.extract %22[0, 0, 0] : f32 from vector<1x1x1xf32>
      %c0_18 = arith.constant 0 : index
      %24 = memref.load %arg3[%c0_18] : memref<1xf32, #tpu.memory_space<smem>>
      memref.store %23, %arg3[%c0_18] : memref<1xf32, #tpu.memory_space<smem>>
    } else {
    }
    return
  }
  func.func @transform_0(%arg0: i32) -> (i32, i32) {
    %c0_i32 = arith.constant 0 : i32
    %c0_i32_0 = arith.constant 0 : i32
    return %arg0, %c0_i32 : i32, i32
  }
  func.func @transform_1(%arg0: i32) -> i32 {
    %c0_i32 = arith.constant 0 : i32
    %c0_i32_0 = arith.constant 0 : i32
    return %c0_i32 : i32
  }
  func.func @transform_2(%arg0: i32) -> i32 {
    %c0_i32 = arith.constant 0 : i32
    %c0_i32_0 = arith.constant 0 : i32
    return %c0_i32 : i32
  }
}

module attributes {stable_mosaic.version = 11 : i64} {
  func.func @_fake_quant_kernel(%arg0: i32, %arg1: memref<3xf32, #tpu.memory_space<smem>>, %arg2: memref<16x128xf32, #tpu.memory_space<vmem>>, %arg3: memref<16x128xf32, #tpu.memory_space<vmem>>) attributes {dimension_semantics = [#tpu.dimension_semantics<parallel>], iteration_bounds = array<i64: 1>, scalar_prefetch = 0 : i64, scratch_operands = 0 : i64, tpu.core_type = #tpu.core_type<tc>, window_params = [{transform_indices = @transform_0, window_bounds = array<i64: 3>}, {transform_indices = @transform_1, window_bounds = array<i64: 16, 128>}, {transform_indices = @transform_2, window_bounds = array<i64: 16, 128>}]} {
    %c0 = arith.constant 0 : index
    %0 = memref.load %arg1[%c0] : memref<3xf32, #tpu.memory_space<smem>>
    %c1 = arith.constant 1 : index
    %1 = memref.load %arg1[%c1] : memref<3xf32, #tpu.memory_space<smem>>
    %c2 = arith.constant 2 : index
    %2 = memref.load %arg1[%c2] : memref<3xf32, #tpu.memory_space<smem>>
    %c0_0 = arith.constant 0 : index
    %c0_1 = arith.constant 0 : index
    %3 = vector.load %arg2[%c0_0, %c0_1] : memref<16x128xf32, #tpu.memory_space<vmem>>, vector<16x128xf32>
    %4 = vector.broadcast %1 : f32 to vector<16x128xf32>
    %5 = arith.mulf %3, %4 : vector<16x128xf32>
    %6 = math.roundeven %5 : vector<16x128xf32>
    %7 = vector.broadcast %2 : f32 to vector<16x128xf32>
    %8 = arith.addf %6, %7 : vector<16x128xf32>
    %cst = arith.constant 0.000000e+00 : f32
    %cst_2 = arith.constant 2.550000e+02 : f32
    %9 = vector.broadcast %cst : f32 to vector<16x128xf32>
    %10 = arith.maximumf %9, %8 : vector<16x128xf32>
    %11 = vector.broadcast %cst_2 : f32 to vector<16x128xf32>
    %12 = arith.minimumf %11, %10 : vector<16x128xf32>
    %13 = vector.broadcast %2 : f32 to vector<16x128xf32>
    %14 = arith.subf %12, %13 : vector<16x128xf32>
    %15 = vector.broadcast %0 : f32 to vector<16x128xf32>
    %16 = arith.mulf %14, %15 : vector<16x128xf32>
    %c0_3 = arith.constant 0 : index
    %c0_4 = arith.constant 0 : index
    %17 = vector.load %arg3[%c0_3, %c0_4] : memref<16x128xf32, #tpu.memory_space<vmem>>, vector<16x128xf32>
    tpu.vector_store %arg3[%c0_3, %c0_4], %16 {strides = array<i32>} : memref<16x128xf32, #tpu.memory_space<vmem>>, vector<16x128xf32>,
    return
  }
  func.func @transform_0(%arg0: i32) -> i32 {
    %c0_i32 = arith.constant 0 : i32
    %c0_i32_0 = arith.constant 0 : i32
    return %c0_i32 : i32
  }
  func.func @transform_1(%arg0: i32) -> (i32, i32) {
    %c0_i32 = arith.constant 0 : i32
    %c0_i32_0 = arith.constant 0 : i32
    return %arg0, %c0_i32 : i32, i32
  }
  func.func @transform_2(%arg0: i32) -> (i32, i32) {
    %c0_i32 = arith.constant 0 : i32
    %c0_i32_0 = arith.constant 0 : i32
    return %arg0, %c0_i32 : i32, i32
  }
}

</mosaic_0001>

<llo_original>
// kernel: branch_1_fun.9
$region0: #{branch_1_fun.9}
  #allocation0 [shape = 'u32[]', space=smem, size = 0x4, offset = 0x4, fixed_abs, tag = 'smem constant byte address 0x4 - core index']
  #allocation1 [shape = 'u32[144,128]{1,0:T(1,128)}', space=vmem, size = 0x12000, scoped, tag = 'internal scratch']
  #allocation2 [shape = 'f32[16,128]{1,0:T(8,128)}', space=vmem, size = 0x2000, scoped, tag = 'scratch operand']
  #allocation3 [shape = 'f32[16,128]{1,0:T(8,128)}', space=vmem, size = 0x2000, scoped, tag = 'scratch operand']
  %s0 = inlined_call_operand.hbm [shape: f32[16,128], index: 0, kind: input, shape index: {}]
  %s1 = inlined_call_operand.hbm [shape: f32[1], index: 1, kind: output, shape index: {0}]
  %s2 = inlined_call_operand.hbm [shape: f32[1], index: 2, kind: output, shape index: {1}]
  %3 = xla_tuple %s1, %s2
  %s4 = sld [smem:[#allocation0]]
  $region34: #{branch_1_fun.9} parent=0
    _
  %s6 = ssub.s32 1, %s4
  %s7 = scalar_select 0, %s6, %s4
  $region1: #{branch_1_fun.9} parent=0
    #allocation4 [shape = 'u8[8192]{0}', space=vmem, size = 0x2000, scoped, tag = 'input window, operand 0, single buffered']
    #allocation5 [shape = 's32[1]{0}', space=sflag, size = 0x4, scoped, tag = 'scoped memory for branch_1_fun.9']
    #allocation6 [shape = 's32[1]{0}', space=sflag, size = 0x4, scoped, tag = 'scoped memory for branch_1_fun.9']
    #allocation7 [shape = 'u8[512]{0}', space=smem, size = 0x200, scoped, tag = 'output window, operand 0, single buffered']
    #allocation8 [shape = 'u8[512]{0}', space=smem, size = 0x200, scoped, tag = 'output window, operand 1, single buffered']
    #allocation9 [shape = 's32[1]{0}', space=sflag, size = 0x4, scoped, tag = 'scoped memory for branch_1_fun.9']
    %8 = vsyncpa [#allocation5], 0
    %9 = vsyncpa [#allocation6], 0
    %10 = vsyncpa [#allocation9], 0
    // Predicated region
    $region2: #{branch_1_fun.9} parent=1 // pred_check
      _
    $region3: #{branch_1_fun.9} parent=1 // pred_check_branch
      %12 = sbr.rel (0) target = $region5
    $region4: #{branch_1_fun.9} parent=1 // pred_region
      %s14 = ssub.s32 256, 256
      %15 = vsyncadd [#allocation5], %s14
      %s16 = sshll.u32 [#allocation4], 4
      %s17 = int_to_ptr.vmem [resolvable:$true] %s16
      %22 = dma.hbm_to_vmem [thread:$0]  %s0, 256, %s17, [#allocation5], 128, 128, 8
    $region5: #{branch_1_fun.9} parent=1 // pred_fallthru
      _
    // Predicated region
    $region6: #{branch_1_fun.9} parent=1 // pred_check
      _
    $region7: #{branch_1_fun.9} parent=1 // pred_check_branch
      %24 = sbr.rel (0) target = $region9
    $region8: #{branch_1_fun.9} parent=1 // pred_region
      %25 = dma.done [#allocation5], 256
    $region9: #{branch_1_fun.9} parent=1 // pred_fallthru
      _
    %p26 = scmp.eq.s32.totalorder 0, 0
    // Predicated region
    $region10: #{branch_1_fun.9} parent=1 // pred_check
      %p27 = pneg %p26
    $region11: #{branch_1_fun.9} parent=1 // pred_check_branch
      %29 = sbr.rel (%p27) target = $region13
    $region12: #{branch_1_fun.9} parent=1 // pred_region
      %30 = vst [vmem:[#allocation2] sm:$0xff] inf
      %31 = vst [vmem:[#allocation2 + $0x8] sm:$0xff] inf
      %32 = vst [vmem:[#allocation3] sm:$0xff] -inf
      %33 = vst [vmem:[#allocation3 + $0x8] sm:$0xff] -inf
    $region13: #{branch_1_fun.9} parent=1 // pred_fallthru
      _
    %v34 = vld [vmem:[#allocation4] sm:$0xff]
    %v35 = vld [vmem:[#allocation4 + $0x8] sm:$0xff]
    %v36 = vld [vmem:[#allocation2] sm:$0xff]
    %v37 = vld [vmem:[#allocation2 + $0x8] sm:$0xff]
    %v38 = vmin.f32 %v36, %v34
    %v39 = vmin.f32 %v37, %v35
    %40 = vst [vmem:[#allocation2] sm:$0xff] %v38
    %41 = vst [vmem:[#allocation2 + $0x8] sm:$0xff] %v39
    %v42 = vld [vmem:[#allocation3] sm:$0xff]
    %v43 = vld [vmem:[#allocation3 + $0x8] sm:$0xff]
    %v44 = vmax.f32 %v42, %v34
    %v45 = vmax.f32 %v43, %v35
    %46 = vst [vmem:[#allocation3] sm:$0xff] %v44
    %47 = vst [vmem:[#allocation3 + $0x8] sm:$0xff] %v45
    // Predicated region
    $region14: #{branch_1_fun.9} parent=1 // pred_check
      %p48 = pneg %p26
    $region15: #{branch_1_fun.9} parent=1 // pred_check_branch
      %50 = sbr.rel (%p48) target = $region17
    $region16: #{branch_1_fun.9} parent=1 // pred_region
      %v51 = vld [vmem:[#allocation2] sm:$0xff]
      %v52 = vld [vmem:[#allocation2 + $0x8] sm:$0xff]
      %v53 = vmin.f32 %v51, %v52
      %54 = vmin.xlane.f32.xlu0 %v53
      %v55 = vpop.xlane.xlu0 %54
      %v56 = vrot.slane %v55, 4
      %v57 = vmin.f32 %v55, %v56
      %v58 = vrot.slane %v57, 2
      %v59 = vmin.f32 %v57, %v58
      %v60 = vrot.slane %v59, 1
      %v61 = vmin.f32 %v59, %v60
      %s62 = vtos %v61
      %s63 = scalar_lea.smem [#allocation7], 0
      %64 = sst [smem:[%s63]] %s62
      %v65 = vld [vmem:[#allocation3] sm:$0xff]
      %v66 = vld [vmem:[#allocation3 + $0x8] sm:$0xff]
      %v67 = vmax.f32 %v65, %v66
      %68 = vmax.xlane.f32.xlu0 %v67
      %v69 = vpop.xlane.xlu0 %68
      %v70 = vrot.slane %v69, 4
      %v71 = vmax.f32 %v69, %v70
      %v72 = vrot.slane %v71, 2
      %v73 = vmax.f32 %v71, %v72
      %v74 = vrot.slane %v73, 1
      %v75 = vmax.f32 %v73, %v74
      %s76 = vtos %v75
      %s77 = scalar_lea.smem [#allocation8], 0
      %78 = sst [smem:[%s77]] %s76
    $region17: #{branch_1_fun.9} parent=1 // pred_fallthru
      _
    // Predicated region
    $region18: #{branch_1_fun.9} parent=1 // pred_check
      _
    $region19: #{branch_1_fun.9} parent=1 // pred_check_branch
      %80 = sbr.rel (0) target = $region21
    $region20: #{branch_1_fun.9} parent=1 // pred_region
      %s82 = ssub.s32 16, 16
      %83 = vsyncadd [#allocation6], %s82
      %86 = dma.smem_to_hbm [#allocation7], 16, %s1, [#allocation6]
    $region21: #{branch_1_fun.9} parent=1 // pred_fallthru
      _
    // Predicated region
    $region22: #{branch_1_fun.9} parent=1 // pred_check
      _
    $region23: #{branch_1_fun.9} parent=1 // pred_check_branch
      %88 = sbr.rel (0) target = $region25
    $region24: #{branch_1_fun.9} parent=1 // pred_region
      %s90 = ssub.s32 16, 16
      %91 = vsyncadd [#allocation9], %s90
      %94 = dma.smem_to_hbm [#allocation8], 16, %s2, [#allocation9]
    $region25: #{branch_1_fun.9} parent=1 // pred_fallthru
      _
    // Predicated region
    $region26: #{branch_1_fun.9} parent=1 // pred_check
      _
    $region27: #{branch_1_fun.9} parent=1 // pred_check_branch
      %96 = sbr.rel (0) target = $region29
    $region28: #{branch_1_fun.9} parent=1 // pred_region
      %97 = dma.done [#allocation6], 16
    $region29: #{branch_1_fun.9} parent=1 // pred_fallthru
      _
    // Predicated region
    $region30: #{branch_1_fun.9} parent=1 // pred_check
      _
    $region31: #{branch_1_fun.9} parent=1 // pred_check_branch
      %99 = sbr.rel (0) target = $region33
    $region32: #{branch_1_fun.9} parent=1 // pred_region
      %100 = dma.done [#allocation9], 16
    $region33: #{branch_1_fun.9} parent=1 // pred_fallthru
      _
    %101 = sfence
    %102 = vsyncpa [#allocation5], 1
    %103 = vsyncpa [#allocation6], 1
    %104 = vsyncpa [#allocation9], 1

// kernel: branch_1_fun.10
$region0: #{branch_1_fun.10}
  #allocation0 [shape = 'u32[]', space=smem, size = 0x4, offset = 0x4, fixed_abs, tag = 'smem constant byte address 0x4 - core index']
  #allocation1 [shape = 'u32[144,128]{1,0:T(1,128)}', space=vmem, size = 0x12000, scoped, tag = 'internal scratch']
  %s0 = inlined_call_operand.vmem [shape: f32[3], index: 0, kind: input, shape index: {}]
  %s1 = inlined_call_operand.hbm [shape: f32[16,128], index: 1, kind: input, shape index: {}]
  %s2 = inlined_call_operand.vmem [shape: f32[16,128], index: 2, kind: output, shape index: {}]
  %s3 = sld [smem:[#allocation0]]
  $region26: #{branch_1_fun.10} parent=0
    _
  %s5 = ssub.s32 1, %s3
  %s6 = scalar_select 0, %s5, %s3
  $region1: #{branch_1_fun.10} parent=0
    #allocation2 [shape = 'u8[512]{0}', space=smem, size = 0x200, scoped, tag = 'input window, operand 0, single buffered']
    #allocation3 [shape = 's32[1]{0}', space=sflag, size = 0x4, scoped, tag = 'scoped memory for branch_1_fun.10']
    #allocation4 [shape = 's32[1]{0}', space=sflag, size = 0x4, scoped, tag = 'scoped memory for branch_1_fun.10']
    #allocation5 [shape = 'u8[8192]{0}', space=vmem, size = 0x2000, scoped, tag = 'input window, operand 1, single buffered']
    %7 = vsyncpa [#allocation4], 0
    %8 = vsyncpa [#allocation3], 0
    // Predicated region
    $region2: #{branch_1_fun.10} parent=1 // pred_check
      _
    $region3: #{branch_1_fun.10} parent=1 // pred_check_branch
      %10 = sbr.rel (0) target = $region5
    $region4: #{branch_1_fun.10} parent=1 // pred_region
      %s12 = ssub.s32 16, 16
      %13 = vsyncadd [#allocation4], %s12
      %s15 = sshll.u32 %s0, 4
      %s16 = int_to_ptr.vmem [resolvable:$true] %s15
      %18 = dma.vmem_to_smem %s16, 16, [#allocation2], [#allocation4]
    $region5: #{branch_1_fun.10} parent=1 // pred_fallthru
      _
    // Predicated region
    $region6: #{branch_1_fun.10} parent=1 // pred_check
      _
    $region7: #{branch_1_fun.10} parent=1 // pred_check_branch
      %20 = sbr.rel (0) target = $region9
    $region8: #{branch_1_fun.10} parent=1 // pred_region
      %s22 = ssub.s32 256, 256
      %23 = vsyncadd [#allocation3], %s22
      %s24 = sshll.u32 [#allocation5], 4
      %s25 = int_to_ptr.vmem [resolvable:$true] %s24
      %30 = dma.hbm_to_vmem [thread:$0]  %s1, 256, %s25, [#allocation3], 128, 128, 8
    $region9: #{branch_1_fun.10} parent=1 // pred_fallthru
      _
    // Predicated region
    $region10: #{branch_1_fun.10} parent=1 // pred_check
      _
    $region11: #{branch_1_fun.10} parent=1 // pred_check_branch
      %32 = sbr.rel (0) target = $region13
    $region12: #{branch_1_fun.10} parent=1 // pred_region
      %33 = dma.done [#allocation4], 16
    $region13: #{branch_1_fun.10} parent=1 // pred_fallthru
      _
    // Predicated region
    $region14: #{branch_1_fun.10} parent=1 // pred_check
      _
    $region15: #{branch_1_fun.10} parent=1 // pred_check_branch
      %35 = sbr.rel (0) target = $region17
    $region16: #{branch_1_fun.10} parent=1 // pred_region
      %36 = dma.done [#allocation3], 256
    $region17: #{branch_1_fun.10} parent=1 // pred_fallthru
      _
    %37 = sfence
    %s38 = sld [smem:[#allocation2]]
    %s39 = sld [smem:[#allocation2 + $0x1]]
    %s40 = sld [smem:[#allocation2 + $0x2]]
    %v41 = vld [vmem:[#allocation5] sm:$0xff]
    %v42 = vld [vmem:[#allocation5 + $0x8] sm:$0xff]
    %v43 = vstv %s39
    %v44 = vmul.f32 %v41, %v43
    %v45 = vmul.f32 %v42, %v43
    %v46 = vround.ne.pseudo %v44
    %v47 = vround.ne.pseudo %v45
    %v48 = vstv %s40
    %v49 = vadd.f32 %v46, %v48
    %v50 = vadd.f32 %v47, %v48
    %v51 = vmax.f32 %v49, 0.0
    %v52 = vmax.f32 %v50, 0.0
    %v53 = vmin.f32 %v51, 255.0
    %v54 = vmin.f32 %v52, 255.0
    %v55 = vsub.f32 %v53, %v48
    %v56 = vsub.f32 %v54, %v48
    %v57 = vstv %s38
    %v58 = vmul.f32 %v55, %v57
    %v59 = vmul.f32 %v56, %v57
    %60 = vst [vmem:[%s2] sm:$0xff] %v58
    %61 = vst [vmem:[%s2 + $0x8] sm:$0xff] %v59
    // Predicated region
    $region18: #{branch_1_fun.10} parent=1 // pred_check
      _
    $region19: #{branch_1_fun.10} parent=1 // pred_check_branch
      %63 = sbr.rel (0) target = $region21
    $region20: #{branch_1_fun.10} parent=1 // pred_region
      _
    $region21: #{branch_1_fun.10} parent=1 // pred_fallthru
      _
    // Predicated region
    $region22: #{branch_1_fun.10} parent=1 // pred_check
      _
    $region23: #{branch_1_fun.10} parent=1 // pred_check_branch
      %65 = sbr.rel (0) target = $region25
    $region24: #{branch_1_fun.10} parent=1 // pred_region
      _
    $region25: #{branch_1_fun.10} parent=1 // pred_fallthru
      _
    %66 = vsyncpa [#allocation3], 1
    %67 = vsyncpa [#allocation4], 1

</llo_original>
